<compile_context>
chip_gen: v6e
topology: v6e:2x2x1
jax: 0.10.0
libtpu: 0.0.40
codegen_flags: <defaults>
</compile_context>

<pallas_src>
import functools
import math

import jax
import jax.numpy as jnp
from jax.experimental import pallas as pl
from jax.experimental.pallas import tpu as pltpu


# --------------------------------------------------------------------------- #
# Kernels
# --------------------------------------------------------------------------- #
def _rope_fold_kernel(freq_ref, colpos_ref, cos_ref, sin_ref, *, fold):
    """Folded RoPE-cache kernel (dim folded so the lane axis is a 128-multiple).

    freq_ref:   (1, width) f32, width = fold*dim, freq[c] = inv_freq_full[c % dim]
    colpos_ref: (1, width) i32, colpos[c] = c // dim (position offset of column c)
    cos_ref/sin_ref: (tile_rows, width) output tiles; out[r, c] holds
    cache[(row0 + r) * fold + c // dim, c % dim].
    """
    tile_rows = cos_ref.shape[0]
    row0 = pl.program_id(0) * (tile_rows * fold)
    row = row0 + fold * jax.lax.broadcasted_iota(jnp.int32, (tile_rows, 1), 0)
    t = row + colpos_ref[...]                        # (tile_rows, width) int32, exact
    emb = t.astype(jnp.float32) * freq_ref[...]      # single f32 mul, matches reference
    cos_ref[...] = jnp.cos(emb).astype(cos_ref.dtype)
    sin_ref[...] = jnp.sin(emb).astype(sin_ref.dtype)


def _rope_plain_kernel(freq_ref, cos_ref, sin_ref):
    """fold == 1 path (dim is already a multiple of 128): no colpos input/add."""
    tile_rows = cos_ref.shape[0]
    row = pl.program_id(0) * tile_rows + jax.lax.broadcasted_iota(
        jnp.int32, (tile_rows, 1), 0)
    emb = row.astype(jnp.float32) * freq_ref[...]
    cos_ref[...] = jnp.cos(emb).astype(cos_ref.dtype)
    sin_ref[...] = jnp.sin(emb).astype(sin_ref.dtype)


def _rope_wide_half_kernel(freq_half_ref, cos_ref, sin_ref):
    """Wide-dim kernel (dim % 256 == 0): compute cos/sin on the first half of
    the lane axis only and write the result to both halves."""
    tile_rows = cos_ref.shape[0]
    hd = freq_half_ref.shape[1]
    row = pl.program_id(0) * tile_rows + jax.lax.broadcasted_iota(
        jnp.int32, (tile_rows, 1), 0)
    emb = row.astype(jnp.float32) * freq_half_ref[...]     # (tile_rows, hd)
    c = jnp.cos(emb).astype(cos_ref.dtype)
    s = jnp.sin(emb).astype(sin_ref.dtype)
    cos_ref[:, :hd] = c
    cos_ref[:, hd:] = c
    sin_ref[:, :hd] = s
    sin_ref[:, hd:] = s


# --------------------------------------------------------------------------- #
# Tiling helpers
# --------------------------------------------------------------------------- #
def _sublane_packing(itemsize):
    # sublane packing granularity: f32 -> 8, bf16 -> 16, int8/fp8 -> 32
    return {1: 32, 2: 16, 4: 8}.get(itemsize, 8)


def _round_up(x, m):
    return ((x + m - 1) // m) * m


def _choose_tile_rows(n_rows, width, itemsize, packing):
    """Row tile for the (n_rows, width) outputs.

    Targets ~2 MiB per output block (2 outs x 2 pipeline buffers = 8 MiB,
    within the 32 MiB vmem_limit we request and safe for v5e), then rebalances
    to an EVEN number of roughly equal grid steps so v7x's two TensorCores get
    equal shards under dimension_semantics=("parallel",).
    """
    if n_rows <= packing:
        return n_rows  # single full-extent block (legal even if not packing-aligned)
    row_bytes = width * itemsize
    budget_rows = max(packing, ((2 << 20) // row_bytes) // packing * packing)
    tile = min(budget_rows, _round_up(n_rows, packing))
    steps = pl.cdiv(n_rows, tile)
    steps = max(2, steps + (steps % 2))            # even step count, >= 2
    tile = _round_up(pl.cdiv(n_rows, steps), packing)
    return max(packing, min(tile, _round_up(n_rows, packing)))


# --------------------------------------------------------------------------- #
# Module
# --------------------------------------------------------------------------- #
class TimeMoeRotaryEmbeddingPallas:
    """Pallas TPU implementation of TimeMoeRotaryEmbedding."""

    def __init__(self, dim, max_position_embeddings=2048, base=10000):
        self.dim = dim
        self.max_position_embeddings = max_position_embeddings
        self.base = base
        # inv_freq = 1 / base^(arange(0, dim, 2) / dim)
        exponents = jnp.arange(0, dim, 2, dtype=jnp.int32).astype(jnp.float32) / dim
        self.inv_freq = (1.0 / (base ** exponents)).astype(jnp.float32)  # (ceil(dim/2),)
        self.emb_dim = 2 * self.inv_freq.shape[0]                        # == dim for even dim
        self.inv_freq_full = jnp.concatenate([self.inv_freq, self.inv_freq])  # (emb_dim,)
        # One compile + one launch at construction (PyTorch precomputes the same
        # buffers); forward only slices/casts unless seq_len exceeds the cache.
        self._set_cos_sin_cache(max_position_embeddings, jnp.float32)

    # -- cache construction ------------------------------------------------- #
    def _set_cos_sin_cache(self, seq_len, dtype):
        dtype = jnp.dtype(dtype)
        emb_dim = self.emb_dim
        itemsize = dtype.itemsize
        packing = _sublane_packing(itemsize)
        cparams = pltpu.CompilerParams(
            dimension_semantics=("parallel",),
            vmem_limit_bytes=32 * 1024 * 1024,
        )

        if emb_dim % 256 == 0:
            # Lane-wide path: half-dim transcendentals duplicated into both halves.
            hd = emb_dim // 2
            tile_rows = _choose_tile_rows(seq_len, emb_dim, itemsize, packing)
            n_rows = pl.cdiv(seq_len, tile_rows) * tile_rows   # all blocks full
            grid = (n_rows // tile_rows,)
            cos2d, sin2d = pl.pallas_call(
                _rope_wide_half_kernel,
                out_shape=(jax.ShapeDtypeStruct((n_rows, emb_dim), dtype),
                           jax.ShapeDtypeStruct((n_rows, emb_dim), dtype)),
                grid_spec=pltpu.PrefetchScalarGridSpec(
                    num_scalar_prefetch=0,
                    grid=grid,
                    in_specs=[pl.BlockSpec((1, hd), lambda i: (0, 0))],
                    out_specs=[pl.BlockSpec((tile_rows, emb_dim), lambda i: (i, 0)),
                               pl.BlockSpec((tile_rows, emb_dim), lambda i: (i, 0))],
                ),
                compiler_params=cparams,
            )(self.inv_freq.reshape(1, hd))
            cached_len = n_rows
        else:
            # Folded path: always store a lane-dense (multiple-of-128) last dim.
            fold = math.lcm(emb_dim, 128) // emb_dim
            width = fold * emb_dim
            n_rows_min = pl.cdiv(seq_len, fold)
            tile_rows = _choose_tile_rows(n_rows_min, width, itemsize, packing)
            n_rows = pl.cdiv(n_rows_min, tile_rows) * tile_rows  # all blocks full
            grid = (n_rows // tile_rows,)

            if fold > 1:
                freq = jnp.tile(self.inv_freq_full, fold).reshape(1, width)
                colpos = (jnp.arange(width, dtype=jnp.int32) // emb_dim).reshape(1, width)
                kernel = functools.partial(_rope_fold_kernel, fold=fold)
                inputs = (freq, colpos)
                in_specs = [pl.BlockSpec((1, width), lambda i: (0, 0)),
                            pl.BlockSpec((1, width), lambda i: (0, 0))]
            else:
                kernel = _rope_plain_kernel
                inputs = (self.inv_freq_full.reshape(1, width),)
                in_specs = [pl.BlockSpec((1, width), lambda i: (0, 0))]

            cos2d, sin2d = pl.pallas_call(
                kernel,
                out_shape=(jax.ShapeDtypeStruct((n_rows, width), dtype),
                           jax.ShapeDtypeStruct((n_rows, width), dtype)),
                grid_spec=pltpu.PrefetchScalarGridSpec(
                    num_scalar_prefetch=0,
                    grid=grid,
                    in_specs=in_specs,
                    out_specs=[pl.BlockSpec((tile_rows, width), lambda i: (i, 0)),
                               pl.BlockSpec((tile_rows, width), lambda i: (i, 0))],
                ),
                compiler_params=cparams,
            )(*inputs)
            cached_len = n_rows * fold
            # (n_rows, fold*dim) -> (cached_len, dim): contiguous row-major, free reshape.
            cos2d = cos2d.reshape(cached_len, emb_dim)
            sin2d = sin2d.reshape(cached_len, emb_dim)

        self.cos_cached = cos2d            # may hold a few padded rows past seq_len
        self.sin_cached = sin2d
        self.max_seq_len_cached = seq_len

    # -- forward ------------------------------------------------------------ #
    def __call__(self, x, seq_len=None):
        if seq_len is None:
            seq_len = x.shape[-2]          # standard rotary usage (x: (..., seq, dim))
        seq_len = int(seq_len)
        if seq_len > self.max_seq_len_cached:
            # Extension path mirrors PyTorch: re-build the cache in x.dtype.
            self._set_cos_sin_cache(seq_len, jnp.dtype(x.dtype))
        dtype = jnp.dtype(x.dtype)
        return (self.cos_cached[:seq_len].astype(dtype),
                self.sin_cached[:seq_len].astype(dtype))


# --------------------------------------------------------------------------- #
# Reference + tests
# --------------------------------------------------------------------------- #
def _reference(dim, base, seq_len, dtype):
    exponents = jnp.arange(0, dim, 2, dtype=jnp.int32).astype(jnp.float32) / dim
    inv_freq = 1.0 / (base ** exponents)
    t = jnp.arange(seq_len, dtype=jnp.float32)
    freqs = jnp.outer(t, inv_freq)
    emb = jnp.concatenate([freqs, freqs], axis=-1)
    return jnp.cos(emb).astype(dtype), jnp.sin(emb).astype(dtype)


if __name__ == "__main__":
    key = jax.random.PRNGKey(0)

    cases = [
        # (batch, seq_len, dim, max_pos, dtype, atol) -- exercises every layout path
        (2, 16, 32, 64, jnp.float32, 2e-5),    # folded lane-dense path (fold=4)
        (2, 48, 256, 64, jnp.float32, 2e-5),   # wide half-compute path
        (2, 16, 64, 64, jnp.bfloat16, 1e-2),   # folded path (fold=2), bf16 forward cast
        (2, 24, 48, 64, jnp.float32, 2e-5),    # lcm folding (fold=8, width=384)
        (2, 100, 64, 32, jnp.bfloat16, 1e-2),  # seq_len > max: cache extension path
    ]

    for batch, seq_len, dim, max_pos, dtype, atol in cases:
        x = jax.random.normal(key, (batch, seq_len, dim), dtype=jnp.float32).astype(dtype)
        rope = TimeMoeRotaryEmbeddingPallas(dim=dim, max_position_embeddings=max_pos,
                                            base=10000)
        cos, sin = rope(x, seq_len=seq_len)
        cos = jax.block_until_ready(cos)
        sin = jax.block_until_ready(sin)

        assert cos.shape == (seq_len, dim) and sin.shape == (seq_len, dim)
        assert cos.dtype == x.dtype and sin.dtype == x.dtype

        cos_ref, sin_ref = _reference(dim, 10000, seq_len, dtype)
        assert jnp.allclose(cos.astype(jnp.float32), cos_ref.astype(jnp.float32),
                            atol=atol), f"cos mismatch (dim={dim}, seq={seq_len})"
        assert jnp.allclose(sin.astype(jnp.float32), sin_ref.astype(jnp.float32),
                            atol=atol), f"sin mismatch (dim={dim}, seq={seq_len})"

        # Repeated call (seq_len derived from x) must reuse the resident cache
        # buffers (no re-launch of the Pallas kernel, no recompile).
        cached_cos_id, cached_sin_id = id(rope.cos_cached), id(rope.sin_cached)
        cos2, sin2 = rope(x)
        jax.block_until_ready(cos2)
        assert id(rope.cos_cached) == cached_cos_id
        assert id(rope.sin_cached) == cached_sin_id
        assert cos2.shape == (seq_len, dim) and cos2.dtype == x.dtype

    print("KERNEL_OK")
</pallas_src>

<mosaic_0001>
module attributes {stable_mosaic.version = 11 : i64} {
  func.func @_rope_fold_kernel(%arg0: i32, %arg1: memref<1x128xf32, #tpu.memory_space<vmem>>, %arg2: memref<1x128xi32, #tpu.memory_space<vmem>>, %arg3: memref<8x128xf32, #tpu.memory_space<vmem>>, %arg4: memref<8x128xf32, #tpu.memory_space<vmem>>) attributes {dimension_semantics = [#tpu.dimension_semantics<parallel>], iteration_bounds = array<i64: 2>, scalar_prefetch = 0 : i64, scratch_operands = 0 : i64, tpu.core_type = #tpu.core_type<tc>, window_params = [{pipeline_mode = #tpu.pipeline_mode<synchronous>, transform_indices = @transform_0, window_bounds = array<i64: 1, 128>}, {pipeline_mode = #tpu.pipeline_mode<synchronous>, transform_indices = @transform_1, window_bounds = array<i64: 1, 128>}, {transform_indices = @transform_2, window_bounds = array<i64: 8, 128>}, {transform_indices = @transform_3, window_bounds = array<i64: 8, 128>}]} {
    %c32_i32 = arith.constant 32 : i32
    %0 = arith.muli %arg0, %c32_i32 : i32
    %1 = tpu.iota {dimensions = array<i32: 0>} : vector<8x1xi32>
    %c4_i32 = arith.constant 4 : i32
    %2 = vector.broadcast %c4_i32 : i32 to vector<8x1xi32>
    %3 = arith.muli %2, %1 : vector<8x1xi32>
    %4 = vector.broadcast %0 : i32 to vector<8x1xi32>
    %5 = arith.addi %4, %3 : vector<8x1xi32>
    %c0 = arith.constant 0 : index
    %c0_0 = arith.constant 0 : index
    %6 = vector.load %arg2[%c0, %c0_0] : memref<1x128xi32, #tpu.memory_space<vmem>>, vector<1x128xi32>
    %7 = vector.broadcast %5 : vector<8x1xi32> to vector<8x128xi32>
    %8 = vector.broadcast %6 : vector<1x128xi32> to vector<8x128xi32>
    %9 = arith.addi %7, %8 : vector<8x128xi32>
    %10 = arith.sitofp %9 : vector<8x128xi32> to vector<8x128xf32>
    %c0_1 = arith.constant 0 : index
    %c0_2 = arith.constant 0 : index
    %11 = vector.load %arg1[%c0_1, %c0_2] : memref<1x128xf32, #tpu.memory_space<vmem>>, vector<1x128xf32>
    %12 = vector.broadcast %11 : vector<1x128xf32> to vector<8x128xf32>
    %13 = arith.mulf %10, %12 : vector<8x128xf32>
    %14 = math.cos %13 : vector<8x128xf32>
    %c0_3 = arith.constant 0 : index
    %c0_4 = arith.constant 0 : index
    %15 = vector.load %arg3[%c0_3, %c0_4] : memref<8x128xf32, #tpu.memory_space<vmem>>, vector<8x128xf32>
    tpu.vector_store %arg3[%c0_3, %c0_4], %14 {strides = array<i32>} : memref<8x128xf32, #tpu.memory_space<vmem>>, vector<8x128xf32>,
    %16 = math.sin %13 : vector<8x128xf32>
    %c0_5 = arith.constant 0 : index
    %c0_6 = arith.constant 0 : index
    %17 = vector.load %arg4[%c0_5, %c0_6] : memref<8x128xf32, #tpu.memory_space<vmem>>, vector<8x128xf32>
    tpu.vector_store %arg4[%c0_5, %c0_6], %16 {strides = array<i32>} : memref<8x128xf32, #tpu.memory_space<vmem>>, vector<8x128xf32>,
    return
  }
  func.func @transform_0(%arg0: i32) -> (i32, i32) {
    %c0_i32 = arith.constant 0 : i32
    %c0_i32_0 = arith.constant 0 : i32
    %c0_i32_1 = arith.constant 0 : i32
    return %c0_i32, %c0_i32_0 : i32, i32
  }
  func.func @transform_1(%arg0: i32) -> (i32, i32) {
    %c0_i32 = arith.constant 0 : i32
    %c0_i32_0 = arith.constant 0 : i32
    %c0_i32_1 = arith.constant 0 : i32
    return %c0_i32, %c0_i32_0 : i32, i32
  }
  func.func @transform_2(%arg0: i32) -> (i32, i32) {
    %c0_i32 = arith.constant 0 : i32
    %c0_i32_0 = arith.constant 0 : i32
    return %arg0, %c0_i32 : i32, i32
  }
  func.func @transform_3(%arg0: i32) -> (i32, i32) {
    %c0_i32 = arith.constant 0 : i32
    %c0_i32_0 = arith.constant 0 : i32
    return %arg0, %c0_i32 : i32, i32
  }
}

</mosaic_0001>

<llo_original>
// kernel: tpu_custom_call.1
$region0: #{tpu_custom_call.1}
  #allocation0 [shape = 'u32[]', space=smem, size = 0x4, offset = 0x4, fixed_abs, tag = 'smem constant byte address 0x4 - core index']
  #allocation1 [shape = 'u32[144,128]{1,0:T(1,128)}', space=vmem, size = 0x12000, scoped, tag = 'internal scratch']
  %s0 = inlined_call_operand.hbm [shape: f32[1,128], index: 0, kind: input, shape index: {}]
  %s1 = inlined_call_operand.vmem [shape: s32[1,128], index: 1, kind: input, shape index: {}]
  %s2 = inlined_call_operand.hbm [shape: f32[16,128], index: 2, kind: output, shape index: {0}]
  %s3 = inlined_call_operand.hbm [shape: f32[16,128], index: 3, kind: output, shape index: {1}]
  %4 = xla_tuple %s2, %s3
  %s5 = sld [smem:[#allocation0]]
  $region53: #{tpu_custom_call.1} parent=0
    _
  %s7 = ssub.s32 1, %s5
  %s8 = scalar_select 0, %s7, %s5
  $region1: #{tpu_custom_call.1} parent=0
    #allocation2 [shape = 'u8[512]{0}', space=vmem, size = 0x400, scoped, tag = 'input window, operand 0, single buffered']
    #allocation3 [shape = 's32[2]{0}', space=sflag, size = 0x8, scoped, tag = 'scoped memory for tpu_custom_call.1']
    #allocation4 [shape = 's32[2]{0}', space=sflag, size = 0x8, scoped, tag = 'scoped memory for tpu_custom_call.1']
    #allocation5 [shape = 'u8[8192]{0}', space=vmem, size = 0x2000, scoped, tag = 'output window, operand 0']
    #allocation6 [shape = 'u8[8192]{0}', space=vmem, size = 0x2000, scoped, tag = 'output window, operand 1']
    #allocation7 [shape = 's32[2]{0}', space=sflag, size = 0x8, scoped, tag = 'scoped memory for tpu_custom_call.1']
    %9 = vsyncpa [#allocation3], 0
    %10 = vsyncpa [#allocation4], 0
    %s11 = scalar_lea.sflag [#allocation4], 1
    %12 = vsyncpa %s11, 0
    %13 = vsyncpa [#allocation7], 0
    %s14 = scalar_lea.sflag [#allocation7], 1
    %15 = vsyncpa %s14, 0
    loop: start=0, step=1, limit=4
    $region2: #{tpu_custom_call.1} parent=1 // loop_pre_header
      _
    $region3: #{tpu_custom_call.1} parent=1 // loop_header
      %s17 = sphi 0, %s21
      %p18 = scmp.ge.s32.totalorder %s17, 4
      %s25 = sphi 0, %s25
      %s27 = sphi 0, %s25
      %s28 = sphi 0, %s27
      %s42 = sphi 0, %s28
      %s46 = sphi 0, %s46
      %s48 = sphi 0, %s46
      %s49 = sphi 0, %s48
      %s63 = sphi 0, %s49
      %s69 = sphi 0, %s71
      %s72 = sphi 0, %s69
      %s73 = sphi 0, %s72
      %s89 = sphi 0, %s73
      %s95 = sphi 0, %s97
      %s98 = sphi 0, %s95
      %s99 = sphi 0, %s98
      %s115 = sphi 0, %s99
    $region4: #{tpu_custom_call.1} parent=1 // loop_header_branch
      %20 = sbr.rel (%p18) target = $region8
    $region5: #{tpu_custom_call.1} parent=1 // loop_body
      %s22 = ssub.s32 %s17, 1
      %s23 = ssub.s32 %s17, 2
      %s24 = sadd.s32 %s17, 1
      %s26 = sadd.s32 %s25, 1
      %p29 = scmp.eq.s32.totalorder %s17, 1
      %p30 = scmp.ne.s32.totalorder %s25, %s27
      %p31 = scmp.eq.s32.totalorder %s17, 0
      %p32 = por %p30, %p31
      %p33 = scmp.ne.s32.totalorder %s25, %s27
      %p34 = scmp.eq.s32.totalorder %s22, 1
      %p35 = por %p33, %p34
      %p36 = scmp.ne.s32.totalorder %s27, %s28
      %p37 = scmp.eq.s32.totalorder %s22, 0
      %p38 = por %p36, %p37
      %p39 = scmp.ne.s32.totalorder %s27, %s28
      %p40 = scmp.eq.s32.totalorder %s23, 1
      %p41 = por %p39, %p40
      %p43 = scmp.ne.s32.totalorder %s28, %s42
      %p44 = scmp.eq.s32.totalorder %s23, 0
      %p45 = por %p43, %p44
      %s47 = sadd.s32 %s46, 1
      %p50 = scmp.eq.s32.totalorder %s17, 1
      %p51 = scmp.ne.s32.totalorder %s46, %s48
      %p52 = scmp.eq.s32.totalorder %s17, 0
      %p53 = por %p51, %p52
      %p54 = scmp.ne.s32.totalorder %s46, %s48
      %p55 = scmp.eq.s32.totalorder %s22, 1
      %p56 = por %p54, %p55
      %p57 = scmp.ne.s32.totalorder %s48, %s49
      %p58 = scmp.eq.s32.totalorder %s22, 0
      %p59 = por %p57, %p58
      %p60 = scmp.ne.s32.totalorder %s48, %s49
      %p61 = scmp.eq.s32.totalorder %s23, 1
      %p62 = por %p60, %p61
      %p64 = scmp.ne.s32.totalorder %s49, %s63
      %p65 = scmp.eq.s32.totalorder %s23, 0
      %p66 = por %p64, %p65
      %s67 = ssub.s32 %s17, %s24
      %p68 = scmp.eq.s32.totalorder %s67, 0
      %s70 = sadd.s32 %s69, 1
      %s71 = scalar_select %p68, %s69, %s70
      %p74 = pneg %p68
      %p75 = scmp.eq.s32.totalorder %s17, 1
      %p76 = por %p74, %p75
      %p77 = scmp.ne.s32.totalorder %s69, %s72
      %p78 = scmp.eq.s32.totalorder %s17, 0
      %p79 = por %p77, %p78
      %p80 = scmp.ne.s32.totalorder %s69, %s72
      %p81 = scmp.eq.s32.totalorder %s22, 1
      %p82 = por %p80, %p81
      %p83 = scmp.ne.s32.totalorder %s72, %s73
      %p84 = scmp.eq.s32.totalorder %s22, 0
      %p85 = por %p83, %p84
      %p86 = scmp.ne.s32.totalorder %s72, %s73
      %p87 = scmp.eq.s32.totalorder %s23, 1
      %p88 = por %p86, %p87
      %p90 = scmp.ne.s32.totalorder %s73, %s89
      %p91 = scmp.eq.s32.totalorder %s23, 0
      %p92 = por %p90, %p91
      %s93 = ssub.s32 %s17, %s24
      %p94 = scmp.eq.s32.totalorder %s93, 0
      %s96 = sadd.s32 %s95, 1
      %s97 = scalar_select %p94, %s95, %s96
      %p100 = pneg %p94
      %p101 = scmp.eq.s32.totalorder %s17, 1
      %p102 = por %p100, %p101
      %p103 = scmp.ne.s32.totalorder %s95, %s98
      %p104 = scmp.eq.s32.totalorder %s17, 0
      %p105 = por %p103, %p104
      %p106 = scmp.ne.s32.totalorder %s95, %s98
      %p107 = scmp.eq.s32.totalorder %s22, 1
      %p108 = por %p106, %p107
      %p109 = scmp.ne.s32.totalorder %s98, %s99
      %p110 = scmp.eq.s32.totalorder %s22, 0
      %p111 = por %p109, %p110
      %p112 = scmp.ne.s32.totalorder %s98, %s99
      %p113 = scmp.eq.s32.totalorder %s23, 1
      %p114 = por %p112, %p113
      %p116 = scmp.ne.s32.totalorder %s99, %s115
      %p117 = scmp.eq.s32.totalorder %s23, 0
      %p118 = por %p116, %p117
      %p119 = scmp.le.s32.totalorder 1, %s17
      %p120 = scmp.lt.s32.totalorder %s17, 3
      %p121 = pnand %p119, %p120
      %p122 = pneg %p121
      // Predicated region
      $region9: #{tpu_custom_call.1} parent=5 // pred_check
        _
      $region10: #{tpu_custom_call.1} parent=5 // pred_check_branch
        %124 = sbr.rel (%p121) target = $region12
      $region11: #{tpu_custom_call.1} parent=5 // pred_region
        %s125 = ssub.s32 %s17, 1
        // Predicated region
        $region13: #{tpu_custom_call.1} parent=11 // pred_check
          %p126 = pneg %p38
        $region14: #{tpu_custom_call.1} parent=11 // pred_check_branch
          %128 = sbr.rel (%p126) target = $region16
        $region15: #{tpu_custom_call.1} parent=11 // pred_region
          %s130 = ssub.s32 16, 16
          %131 = vsyncadd [#allocation3], %s130
          %s133 = sshll.u32 [#allocation2], 4
          %s134 = int_to_ptr.vmem [resolvable:$true] %s133
          %136 = dma.hbm_to_vmem [thread:$0]  %s0, 16, %s134, [#allocation3]
        $region16: #{tpu_custom_call.1} parent=11 // pred_fallthru
          _
        // Predicated region
        $region17: #{tpu_custom_call.1} parent=11 // pred_check
          %p137 = pneg %p59
        $region18: #{tpu_custom_call.1} parent=11 // pred_check_branch
          %139 = sbr.rel (%p137) target = $region20
        $region19: #{tpu_custom_call.1} parent=11 // pred_region
          _
        $region20: #{tpu_custom_call.1} parent=11 // pred_fallthru
          _
      $region12: #{tpu_custom_call.1} parent=5 // pred_fallthru
        _
      %p140 = scmp.lt.s32.totalorder %s17, 2
      // Predicated region
      $region21: #{tpu_custom_call.1} parent=5 // pred_check
        %p141 = pneg %p140
      $region22: #{tpu_custom_call.1} parent=5 // pred_check_branch
        %143 = sbr.rel (%p141) target = $region24
      $region23: #{tpu_custom_call.1} parent=5 // pred_region
        _
      $region24: #{tpu_custom_call.1} parent=5 // pred_fallthru
        _
      %p144 = scmp.le.s32.totalorder 1, %s17
      %p145 = scmp.lt.s32.totalorder %s17, 3
      %p146 = pnand %p144, %p145
      %p147 = pneg %p146
      // Predicated region
      $region25: #{tpu_custom_call.1} parent=5 // pred_check
        _
      $region26: #{tpu_custom_call.1} parent=5 // pred_check_branch
        %149 = sbr.rel (%p146) target = $region28
      $region27: #{tpu_custom_call.1} parent=5 // pred_region
        %s150 = ssub.s32 %s17, 1
        // Predicated region
        $region29: #{tpu_custom_call.1} parent=27 // pred_check
          %p151 = pneg %p38
        $region30: #{tpu_custom_call.1} parent=27 // pred_check_branch
          %153 = sbr.rel (%p151) target = $region32
        $region31: #{tpu_custom_call.1} parent=27 // pred_region
          %154 = dma.done [#allocation3], 16
        $region32: #{tpu_custom_call.1} parent=27 // pred_fallthru
          _
        %p155 = pneg %p38
        %p156 = pneg %p35
        %p157 = pneg %p59
        %p158 = pneg %p56
        %p159 = pneg %p85
        %p160 = pneg %p82
        %s161 = sand.u32 %s72, 1
        %s162 = scalar_lea.sflag [#allocation4], %s161
        %s163 = sand.u32 %s72, 1
        %s164 = smul.addr %s163, 8
        %s165 = scalar_lea.vmem [#allocation5], %s164
        %p166 = pneg %p111
        %p167 = pneg %p108
        %s168 = sand.u32 %s98, 1
        %s169 = scalar_lea.sflag [#allocation7], %s168
        %s170 = sand.u32 %s98, 1
        %s171 = smul.addr %s170, 8
        %s172 = scalar_lea.vmem [#allocation6], %s171
        %s173 = smul.u32 %s22, 32
        %v174 = vlaneseq
        %v175 = vshrl.u32 %v174, 7
        %v176 = vmul.u32 %v175, 4
        %v177 = vstv %s173
        %v178 = vadd.s32 %v177, %v176
        %v179 = vld [vmem:[%s1] sm:$0x1]
        %v180 = vlaneseq
        %v181 = vshrl.u32 %v180, 7
        %v182 = vsub.s32 0, %v181
        %v183 = vrot.slane %v179, %v182
        %v184 = vadd.s32 %v178, %v183
        %v185 = vcvt.s32.f32 %v184
        %v186 = vld [vmem:[#allocation2] sm:$0x1]
        %v188 = vlaneseq
        %v189 = vshrl.u32 %v188, 7
        %v190 = vsub.s32 0, %v189
        %v191 = vrot.slane %v186, %v190
        %v193 = vmul.f32 %v185, %v191
        %v194 = vand.u32 2147483647, %v193
        %vm195 = vcmp.le.f32.partialorder %v194, 0.7853982
        %vm196 = vcmp.lt.s32.totalorder %v193, 0
        %v197 = vand.u32 %v193, 2139095040
        %v198 = vshrl.u32 %v197, 23
        %v199 = vsub.s32 %v198, 127
        %v200 = vand.u32 2147483647, %v193
        %v201 = vand.u32 %v200, 8388607
        %v202 = vor.u32 %v201, 8388608
        %v203 = vsub.s32 0, %v202
        %v204 = vadd.s32 %v199, 1
        %vm205 = vcmp.gt.s32.totalorder %v204, 0
        %v206 = vsel %vm205, %v204, 0
        %v207 = vshrl.u32 %v206, 5
        %v208 = vand.u32 %v206, 31
        %v209 = vsub.s32 32, %v208
        %v210 = vshrl.u32 683565275, %v209
        %v211 = vshll.u32 683565275, %v208
        %v212 = vshrl.u32 2475754826, %v209
        %v213 = vor.u32 %v211, %v212
        %v214 = vshll.u32 2475754826, %v208
        %v215 = vshrl.u32 2131351028, %v209
        %v216 = vor.u32 %v214, %v215
        %v217 = vshll.u32 2131351028, %v208
        %v218 = vshrl.u32 2102212464, %v209
        %v219 = vor.u32 %v217, %v218
        %v220 = vshll.u32 2102212464, %v208
        %v221 = vshrl.u32 920167782, %v209
        %v222 = vor.u32 %v220, %v221
        %v223 = vshll.u32 920167782, %v208
        %v224 = vshrl.u32 1326507024, %v209
        %v225 = vor.u32 %v223, %v224
        %vm226 = vcmp.lt.s32.totalorder %v207, 1
        %vm227 = vcmp.lt.s32.totalorder %v207, 2
        %vm228 = vcmp.lt.s32.totalorder %v207, 3
        %vm229 = vcmp.lt.s32.totalorder %v207, 4
        %v230 = vsel %vm226, %v210, %v213
        %v231 = vsel %vm229, %v219, 2102212464
        %v232 = vsel %vm228, %v216, %v231
        %v233 = vsel %vm227, %v230, %v232
        %v234 = vsel %vm226, %v213, %v216
        %v235 = vsel %vm229, %v222, 920167782
        %v236 = vsel %vm228, %v219, %v235
        %v237 = vsel %vm227, %v234, %v236
        %v238 = vsel %vm226, %v216, %v219
        %v239 = vsel %vm229, %v225, 1326507024
        %v240 = vsel %vm228, %v222, %v239
        %v241 = vsel %vm227, %v238, %v240
        %v242 = vshll.u32 %v202, 8
        %v243 = vmul.u32.u64.compose %v242, %v241
        %v244 = vextract.low.u32 %v243
        %v245 = vextract.high.u32 %v243
        %v246 = vmul.u32.u64.compose %v242, %v237
        %v247 = vextract.low.u32 %v246
        %v248 = vextract.high.u32 %v246
        %v249 = vmul.u32 %v242, %v233
        %v250 = vadd.s32 %v245, %v247
        %vm251 = vc.u32 %v245, %v247
        %v252 = vadd.s32 %v248, 1
        %v253 = vsel %vm251, %v252, %v248
        %v254 = vadd.s32 %v249, %v253
        %v255 = vadd.s32 %v254, 536870912
        %v256 = vshrl.u32 %v255, 30
        %v257 = vshll.u32 %v256, 30
        %v258 = vsub.s32 %v254, %v257
        %vm259 = vcmp.lt.s32.totalorder %v258, 0
        %v260 = vsub.s32 0, %v258
        %v261 = vsel %vm259, %v260, %v258
        %v262 = vclz %v261
        %v263 = vsub.s32 %v262, 2
        %vm264 = vcmp.gt.s32.totalorder 0, %v263
        %v265 = vsel %vm264, 0, %v263
        %v266 = vsub.s32 32, %v265
        %v267 = vshll.u32 %v258, %v265
        %v268 = vshrl.u32 %v250, %v266
        %v269 = vor.u32 %v267, %v268
        %v270 = vsub.s32 4294967266, %v265
        %v271 = vadd.s32 %v270, 127
        %v272 = vshll.u32 %v271, 23
        %v273 = vor.u32 4788187, %v272
        %v274 = vand.u32 2147483647, %v273
        %v276 = vcvt.s32.f32 %v269
        %v277 = vmul.f32 %v276, %v274
        %v278 = vxor.u32 %v277, 2147483648
        %v279 = vsel %vm196, %v278, %v277
        %v280 = vsub.s32 4, %v256
        %v281 = vsel %vm196, %v280, %v256
        %v282 = vsel %vm195, %v193, %v279
        %v283 = vsel %vm195, 0, %v281
        %v284 = vcosq.f32.pop %v282
        %v285 = vsinq.f32.pop %v282
        %vm286 = vweird.f32 %v193
        %v287 = vand.u32 %v283, 3
        %vm288 = vcmp.lt.s32.totalorder %v287, 2
        %vm289 = vcmp.eq.s32.totalorder %v287, 0
        %v290 = vxor.u32 %v285, 2147483648
        %v291 = vsel %vm289, %v284, %v290
        %vm292 = vcmp.eq.s32.totalorder %v287, 2
        %v293 = vxor.u32 %v284, 2147483648
        %v294 = vsel %vm292, %v293, %v285
        %v295 = vsel %vm288, %v291, %v294
        %v296 = vsel %vm286, nan, %v295
        %297 = vst [vmem:[%s165] sm:$0xff] %v296
        %v298 = vand.u32 2147483647, %v193
        %vm299 = vcmp.le.f32.partialorder %v298, 0.7853982
        %vm300 = vcmp.lt.s32.totalorder %v193, 0
        %v301 = vand.u32 %v193, 2139095040
        %v302 = vshrl.u32 %v301, 23
        %v303 = vsub.s32 %v302, 127
        %v304 = vand.u32 2147483647, %v193
        %v305 = vand.u32 %v304, 8388607
        %v306 = vor.u32 %v305, 8388608
        %v307 = vsub.s32 0, %v306
        %v308 = vadd.s32 %v303, 1
        %vm309 = vcmp.gt.s32.totalorder %v308, 0
        %v310 = vsel %vm309, %v308, 0
        %v311 = vshrl.u32 %v310, 5
        %v312 = vand.u32 %v310, 31
        %v313 = vsub.s32 32, %v312
        %v314 = vshrl.u32 683565275, %v313
        %v315 = vshll.u32 683565275, %v312
        %v316 = vshrl.u32 2475754826, %v313
        %v317 = vor.u32 %v315, %v316
        %v318 = vshll.u32 2475754826, %v312
        %v319 = vshrl.u32 2131351028, %v313
        %v320 = vor.u32 %v318, %v319
        %v321 = vshll.u32 2131351028, %v312
        %v322 = vshrl.u32 2102212464, %v313
        %v323 = vor.u32 %v321, %v322
        %v324 = vshll.u32 2102212464, %v312
        %v325 = vshrl.u32 920167782, %v313
        %v326 = vor.u32 %v324, %v325
        %v327 = vshll.u32 920167782, %v312
        %v328 = vshrl.u32 1326507024, %v313
        %v329 = vor.u32 %v327, %v328
        %vm330 = vcmp.lt.s32.totalorder %v311, 1
        %vm331 = vcmp.lt.s32.totalorder %v311, 2
        %vm332 = vcmp.lt.s32.totalorder %v311, 3
        %vm333 = vcmp.lt.s32.totalorder %v311, 4
        %v334 = vsel %vm330, %v314, %v317
        %v335 = vsel %vm333, %v323, 2102212464
        %v336 = vsel %vm332, %v320, %v335
        %v337 = vsel %vm331, %v334, %v336
        %v338 = vsel %vm330, %v317, %v320
        %v339 = vsel %vm333, %v326, 920167782
        %v340 = vsel %vm332, %v323, %v339
        %v341 = vsel %vm331, %v338, %v340
        %v342 = vsel %vm330, %v320, %v323
        %v343 = vsel %vm333, %v329, 1326507024
        %v344 = vsel %vm332, %v326, %v343
        %v345 = vsel %vm331, %v342, %v344
        %v346 = vshll.u32 %v306, 8
        %v347 = vmul.u32.u64.compose %v346, %v345
        %v348 = vextract.low.u32 %v347
        %v349 = vextract.high.u32 %v347
        %v350 = vmul.u32.u64.compose %v346, %v341
        %v351 = vextract.low.u32 %v350
        %v352 = vextract.high.u32 %v350
        %v353 = vmul.u32 %v346, %v337
        %v354 = vadd.s32 %v349, %v351
        %vm355 = vc.u32 %v349, %v351
        %v356 = vadd.s32 %v352, 1
        %v357 = vsel %vm355, %v356, %v352
        %v358 = vadd.s32 %v353, %v357
        %v359 = vadd.s32 %v358, 536870912
        %v360 = vshrl.u32 %v359, 30
        %v361 = vshll.u32 %v360, 30
        %v362 = vsub.s32 %v358, %v361
        %vm363 = vcmp.lt.s32.totalorder %v362, 0
        %v364 = vsub.s32 0, %v362
        %v365 = vsel %vm363, %v364, %v362
        %v366 = vclz %v365
        %v367 = vsub.s32 %v366, 2
        %vm368 = vcmp.gt.s32.totalorder 0, %v367
        %v369 = vsel %vm368, 0, %v367
        %v370 = vsub.s32 32, %v369
        %v371 = vshll.u32 %v362, %v369
        %v372 = vshrl.u32 %v354, %v370
        %v373 = vor.u32 %v371, %v372
        %v374 = vsub.s32 4294967266, %v369
        %v375 = vadd.s32 %v374, 127
        %v376 = vshll.u32 %v375, 23
        %v377 = vor.u32 4788187, %v376
        %v378 = vand.u32 2147483647, %v377
        %v380 = vcvt.s32.f32 %v373
        %v381 = vmul.f32 %v380, %v378
        %v382 = vxor.u32 %v381, 2147483648
        %v383 = vsel %vm300, %v382, %v381
        %v384 = vsub.s32 4, %v360
        %v385 = vsel %vm300, %v384, %v360
        %v386 = vsel %vm299, %v193, %v383
        %v387 = vsel %vm299, 0, %v385
        %v388 = vcosq.f32.pop %v386
        %v389 = vsinq.f32.pop %v386
        %vm390 = vweird.f32 %v193
        %v391 = vadd.s32 %v387, 3
        %v392 = vand.u32 %v391, 3
        %vm393 = vcmp.lt.s32.totalorder %v392, 2
        %vm394 = vcmp.eq.s32.totalorder %v392, 0
        %v395 = vxor.u32 %v389, 2147483648
        %v396 = vsel %vm394, %v388, %v395
        %vm397 = vcmp.eq.s32.totalorder %v392, 2
        %v398 = vxor.u32 %v388, 2147483648
        %v399 = vsel %vm397, %v398, %v389
        %v400 = vsel %vm393, %v396, %v399
        %v401 = vsel %vm390, nan, %v400
        %402 = vst [vmem:[%s172] sm:$0xff] %v401
        %s403 = sand.u32 %s72, 1
        %s404 = scalar_lea.sflag [#allocation4], %s403
        %s405 = sand.u32 %s72, 1
        %s406 = smul.addr %s405, 8
        %s407 = scalar_lea.vmem [#allocation5], %s406
        %s408 = sand.u32 %s98, 1
        %s409 = scalar_lea.sflag [#allocation7], %s408
        %s410 = sand.u32 %s98, 1
        %s411 = smul.addr %s410, 8
        %s412 = scalar_lea.vmem [#allocation6], %s411
        // Predicated region
        $region33: #{tpu_custom_call.1} parent=27 // pred_check
          %p413 = pneg %p82
        $region34: #{tpu_custom_call.1} parent=27 // pred_check_branch
          %415 = sbr.rel (%p413) target = $region36
        $region35: #{tpu_custom_call.1} parent=27 // pred_region
          %s417 = ssub.s32 128, 128
          %418 = vsyncadd %s404, %s417
          %s419 = smul.addr %s22, 128
          %s420 = scalar_lea.hbm %s2, %s419
          %s422 = sshll.u32 %s407, 4
          %s423 = int_to_ptr.vmem [resolvable:$true] %s422
          %425 = dma.vmem_to_hbm [thread:$0]  %s423, 128, %s420, %s404
        $region36: #{tpu_custom_call.1} parent=27 // pred_fallthru
          _
        // Predicated region
        $region37: #{tpu_custom_call.1} parent=27 // pred_check
          %p426 = pneg %p108
        $region38: #{tpu_custom_call.1} parent=27 // pred_check_branch
          %428 = sbr.rel (%p426) target = $region40
        $region39: #{tpu_custom_call.1} parent=27 // pred_region
          %s430 = ssub.s32 128, 128
          %431 = vsyncadd %s409, %s430
          %s432 = smul.addr %s22, 128
          %s433 = scalar_lea.hbm %s3, %s432
          %s435 = sshll.u32 %s412, 4
          %s436 = int_to_ptr.vmem [resolvable:$true] %s435
          %438 = dma.vmem_to_hbm [thread:$0]  %s436, 128, %s433, %s409
        $region40: #{tpu_custom_call.1} parent=27 // pred_fallthru
          _
      $region28: #{tpu_custom_call.1} parent=5 // pred_fallthru
        _
      %p439 = scmp.le.s32.totalorder 2, %s17
      // Predicated region
      $region41: #{tpu_custom_call.1} parent=5 // pred_check
        %p440 = pneg %p439
      $region42: #{tpu_custom_call.1} parent=5 // pred_check_branch
        %442 = sbr.rel (%p440) target = $region44
      $region43: #{tpu_custom_call.1} parent=5 // pred_region
        %s443 = ssub.s32 %s17, 2
        // Predicated region
        $region45: #{tpu_custom_call.1} parent=43 // pred_check
          %p444 = pneg %p88
        $region46: #{tpu_custom_call.1} parent=43 // pred_check_branch
          %446 = sbr.rel (%p444) target = $region48
        $region47: #{tpu_custom_call.1} parent=43 // pred_region
          %s447 = sand.u32 %s73, 1
          %s448 = scalar_lea.sflag [#allocation4], %s447
          %s449 = sand.u32 %s73, 1
          %s450 = smul.addr %s449, 8
          %s451 = scalar_lea.vmem [#allocation5], %s450
          %452 = dma.done %s448, 128
        $region48: #{tpu_custom_call.1} parent=43 // pred_fallthru
          _
        // Predicated region
        $region49: #{tpu_custom_call.1} parent=43 // pred_check
          %p453 = pneg %p114
        $region50: #{tpu_custom_call.1} parent=43 // pred_check_branch
          %455 = sbr.rel (%p453) target = $region52
        $region51: #{tpu_custom_call.1} parent=43 // pred_region
          %s456 = sand.u32 %s99, 1
          %s457 = scalar_lea.sflag [#allocation7], %s456
          %s458 = sand.u32 %s99, 1
          %s459 = smul.addr %s458, 8
          %s460 = scalar_lea.vmem [#allocation6], %s459
          %461 = dma.done %s457, 128
        $region52: #{tpu_custom_call.1} parent=43 // pred_fallthru
          _
      $region44: #{tpu_custom_call.1} parent=5 // pred_fallthru
        _
    $region6: #{tpu_custom_call.1} parent=1 // loop_footer
      %s21 = sadd.s32 1, %s17
    $region7: #{tpu_custom_call.1} parent=1 // loop_footer_branch
      %16 = sbr.rel target = $region3
    $region8: #{tpu_custom_call.1} parent=1 // loop_exit
      _
    %462 = vsyncpa [#allocation3], 1
    %s463 = scalar_lea.sflag [#allocation3], 1
    %464 = vsyncpa %s463, 1
    %465 = vsyncpa [#allocation4], 1
    %s466 = scalar_lea.sflag [#allocation4], 1
    %467 = vsyncpa %s466, 1
    %468 = vsyncpa [#allocation7], 1
    %s469 = scalar_lea.sflag [#allocation7], 1
    %470 = vsyncpa %s469, 1

</llo_original>
